<compile_context>
chip_gen: v7x
topology: tpu7x:2x2x1
jax: 0.10.0
libtpu: 0.0.40
codegen_flags: <defaults>
</compile_context>

<pallas_src>
import jax
import jax.numpy as jnp
from jax.experimental import pallas as pl
from jax.experimental.pallas import tpu as pltpu


_OUT_SUB = 8      # f32 sublane tile
_OUT_LANE = 128   # lane width -> lane-dense, unmasked stores


# ----------------------------- kernels ------------------------------------ #

def _make_margin_kernel(total_rows, total_cols, tb, tn, margin):
    """Non-adversarial: accumulate sum of max(p - n, -margin) over N blocks."""
    margin = float(margin)

    def kernel(p_ref, n_ref, out_ref):
        i = pl.program_id(0)
        j = pl.program_id(1)

        p = p_ref[...].astype(jnp.float32)            # (tb, 1)
        n = n_ref[...].astype(jnp.float32)            # (tb, tn)

        row_ids = i * tb + jax.lax.broadcasted_iota(jnp.int32, (tb, 1), 0)
        col_ids = j * tn + jax.lax.broadcasted_iota(jnp.int32, (tb, tn), 1)
        valid = (row_ids < total_rows) & (col_ids < total_cols)   # (tb, tn)

        val = jnp.maximum(p - n, jnp.float32(-margin))            # VPU
        val = jnp.where(valid, val, 0.0)                          # mask ragged
        partial = jnp.sum(val)                                    # lane+sublane reduce

        @pl.when(j == 0)
        def _init():
            out_ref[...] = jnp.zeros((1, _OUT_SUB, _OUT_LANE), jnp.float32)

        out_ref[...] = out_ref[...] + partial                     # resident accumulator

    return kernel


def _make_margin_adv_kernel(total_rows, total_cols, tb, tn, margin, temp):
    """Adversarial: online-softmax(-n*T) weighted sum of max(p - n, -margin)."""
    margin = float(margin)
    temp = float(temp)

    def kernel(p_ref, n_ref, out_ref, m_sc, l_sc, acc_sc):
        i = pl.program_id(0)
        j = pl.program_id(1)
        nj = pl.num_programs(1)

        p = p_ref[...].astype(jnp.float32)            # (tb, 1)
        n = n_ref[...].astype(jnp.float32)            # (tb, tn)

        row_ids = i * tb + jax.lax.broadcasted_iota(jnp.int32, (tb, 1), 0)
        row_valid = row_ids < total_rows                              # (tb, 1)
        col_ids = j * tn + jax.lax.broadcasted_iota(jnp.int32, (tb, tn), 1)
        col_valid = col_ids < total_cols                              # (tb, tn)
        valid = row_valid & col_valid

        # Sanitize padded regions so garbage never reaches exp / max.
        n = jnp.where(valid, n, 0.0)
        p = jnp.where(row_valid, p, 0.0)

        @pl.when(j == 0)
        def _init():
            m_sc[...] = jnp.full((tb, 1), -jnp.inf, jnp.float32)
            l_sc[...] = jnp.zeros((tb, 1), jnp.float32)
            acc_sc[...] = jnp.zeros((tb, 1), jnp.float32)

        # Online (flash-style) softmax along the negative axis.
        logits = jnp.where(col_valid, -n * jnp.float32(temp), -jnp.inf)
        m_prev = m_sc[...]                                            # (tb, 1)
        m_new = jnp.maximum(m_prev, jnp.max(logits, axis=-1, keepdims=True))
        alpha = jnp.exp(m_prev - m_new)                               # EUP
        e = jnp.exp(logits - m_new)                                   # masked cols -> 0

        val = jnp.maximum(p - n, jnp.float32(-margin))
        l_sc[...] = alpha * l_sc[...] + jnp.sum(e, axis=-1, keepdims=True)
        acc_sc[...] = alpha * acc_sc[...] + jnp.sum(e * val, axis=-1,
                                                    keepdims=True)
        m_sc[...] = m_new

        @pl.when(j == nj - 1)
        def _finalize():
            row = acc_sc[...] / l_sc[...]          # exact division (free, HBM-bound)
            row = jnp.where(row_valid, row, 0.0)   # drop padded rows
            out_ref[...] = jnp.full((1, _OUT_SUB, _OUT_LANE), jnp.sum(row),
                                    dtype=jnp.float32)

    return kernel


# ----------------------------- block sizing -------------------------------- #

def _physical_vmem_bytes():
    try:
        return int(pltpu.get_tpu_info().vmem_capacity_bytes)
    except Exception:
        return 64 * 1024 * 1024  # conservative (v7x physical VMEM)


def _choose_blocks(b, n, itemsize, packing, budget_bytes,
                   block_rows=None, block_cols=None):
    """Pick (tb, tn) so one n_score block is ~budget_bytes, rows rounded to the
    dtype sublane packing, >=2 batch blocks when possible, N tiled if huge."""

    def round_rows(r):
        if r >= b:
            return b                                  # full dim always legal
        return max(packing, (r // packing) * packing)

    # -- negative-sample (lane) axis ------------------------------------- #
    if block_cols is not None:
        tn = int(block_cols)
        tn = n if tn >= n else max(128, (tn // 128) * 128)
    else:
        if n <= 128 or budget_bytes // max(1, n * itemsize) >= packing:
            tn = n                                    # keep N whole (exact softmax)
        else:                                         # N-tiling for huge N
            tn = (budget_bytes // max(1, packing * itemsize) // 128) * 128
            tn = max(128, min(tn, max(128, (n // 128) * 128)))

    # -- batch (sublane) axis --------------------------------------------- #
    if block_rows is not None:
        tb = round_rows(int(block_rows))
    else:
        tb = budget_bytes // max(1, tn * itemsize)
        if b > packing:
            # Guarantee >=2 batch blocks so both v7x TensorCores stream.
            half = -(-b // 2)
            half = -(-half // packing) * packing
            tb = min(tb, half)
        tb = round_rows(tb)
    return tb, tn


# ----------------------------- wrapper ------------------------------------ #

class MarginLoss:
    """JAX/Pallas equivalent of the PyTorch MarginLoss module (forward only).

    margin / adv_temperature are frozen parameters (requires_grad=False in the
    reference), so they are baked into the kernel as compile-time constants.
    """

    def __init__(self, adv_temperature=None, margin=6.0):
        self.margin = float(margin)
        if adv_temperature is not None:
            self.adv_temperature = float(adv_temperature)
            self.adv_flag = True
        else:
            self.adv_temperature = None
            self.adv_flag = False

    def __call__(self, p_score, n_score, block_rows=None, block_cols=None):
        if p_score.ndim == 1:
            p_score = p_score[:, None]
        b, n = n_score.shape

        n_itemsize = jnp.dtype(n_score.dtype).itemsize
        min_itemsize = min(n_itemsize, jnp.dtype(p_score.dtype).itemsize)
        packing = max(8, 32 // max(1, min_itemsize))   # 8 f32 / 16 bf16 / 32 int8

        phys_vmem = _physical_vmem_bytes()
        budget = max(4 * 1024 * 1024, phys_vmem // 8)          # per n_score block
        vmem_limit = int(min(max(phys_vmem // 2, 32 * 1024 * 1024),
                             64 * 1024 * 1024))

        tb, tn = _choose_blocks(b, n, n_itemsize, packing, budget,
                                block_rows, block_cols)
        nb = -(-b // tb)
        nn = -(-n // tn)

        if self.adv_flag:
            kernel = _make_margin_adv_kernel(b, n, tb, tn, self.margin,
                                             self.adv_temperature)
            scratch = [pltpu.VMEM((tb, 1), jnp.float32)] * 3   # m, l, acc
            inv_count = 1.0 / float(b)
        else:
            kernel = _make_margin_kernel(b, n, tb, tn, self.margin)
            scratch = []
            inv_count = 1.0 / float(b * n)

        partials = pl.pallas_call(
            kernel,
            out_shape=jax.ShapeDtypeStruct((nb, _OUT_SUB, _OUT_LANE),
                                           jnp.float32),
            grid=(nb, nn),
            in_specs=[
                pl.BlockSpec((tb, 1), lambda i, j: (i, 0)),
                pl.BlockSpec((tb, tn), lambda i, j: (i, j)),
            ],
            out_specs=pl.BlockSpec((1, _OUT_SUB, _OUT_LANE),
                                   lambda i, j: (i, 0, 0)),
            scratch_shapes=scratch,
            compiler_params=pltpu.CompilerParams(
                dimension_semantics=("parallel", "arbitrary"),
                vmem_limit_bytes=vmem_limit),
        )(p_score, n_score)

        # Tiny epilogue: each (8,128) slab holds a single replicated partial,
        # so sum the whole slab (no strided gather) and rescale.
        scale = inv_count / float(_OUT_SUB * _OUT_LANE)
        return partials.sum() * jnp.float32(scale) + jnp.float32(self.margin)


# ----------------------------- reference ---------------------------------- #

def _ref_margin_loss(p, n, margin, adv_temperature=None):
    p = p.astype(jnp.float32)
    n = n.astype(jnp.float32)
    margin = jnp.float32(margin)
    if adv_temperature is not None:
        w = jax.nn.softmax(-n * jnp.float32(adv_temperature), axis=-1)
        return (w * jnp.maximum(p - n, -margin)).sum(-1).mean() + margin
    return jnp.maximum(p - n, -margin).mean() + margin


# ------------------------------- main -------------------------------------- #

if __name__ == "__main__":
    key = jax.random.PRNGKey(0)
    kp, kn = jax.random.split(key)

    loss = MarginLoss(adv_temperature=None, margin=6.0)
    loss_adv = MarginLoss(adv_temperature=1.0, margin=6.0)

    # Config 1: f32, N=128, B=16 -> batch split into 2 blocks (megacore path).
    B, N = 16, 128
    p32 = jax.random.normal(kp, (B, 1), dtype=jnp.float32) * 3.0
    n32 = jax.random.normal(kn, (B, N), dtype=jnp.float32) * 3.0

    out = jax.block_until_ready(loss(p32, n32))
    ref = _ref_margin_loss(p32, n32, 6.0)
    assert jnp.allclose(out, ref, rtol=1e-4, atol=1e-4), (out, ref)

    out_adv = jax.block_until_ready(loss_adv(p32, n32))
    ref_adv = _ref_margin_loss(p32, n32, 6.0, 1.0)
    assert jnp.allclose(out_adv, ref_adv, rtol=1e-4, atol=1e-4), (out_adv, ref_adv)

    # Config 2: ragged batch tile (B % TB != 0) and N not a multiple of 128.
    B2, N2 = 20, 96
    kp2, kn2 = jax.random.split(jax.random.PRNGKey(1))
    p2 = jax.random.normal(kp2, (B2, 1), dtype=jnp.float32) * 2.0
    n2 = jax.random.normal(kn2, (B2, N2), dtype=jnp.float32) * 2.0

    out2 = jax.block_until_ready(loss(p2, n2, block_rows=8))
    ref2 = _ref_margin_loss(p2, n2, 6.0)
    assert jnp.allclose(out2, ref2, rtol=1e-4, atol=1e-4), (out2, ref2)

    out2a = jax.block_until_ready(loss_adv(p2, n2, block_rows=8))
    ref2a = _ref_margin_loss(p2, n2, 6.0, 1.0)
    assert jnp.allclose(out2a, ref2a, rtol=1e-4, atol=1e-4), (out2a, ref2a)

    # Config 3: native bf16 inputs (no wrapper-side cast; 16-row sublane packing).
    pbf = p32.astype(jnp.bfloat16)
    nbf = n32.astype(jnp.bfloat16)
    out_bf = jax.block_until_ready(loss_adv(pbf, nbf))
    ref_bf = _ref_margin_loss(pbf, nbf, 6.0, 1.0)
    assert jnp.allclose(out_bf, ref_bf, rtol=1e-4, atol=1e-4), (out_bf, ref_bf)

    # Config 4: forced N-tiling (block_cols=128, N=320 -> 3 N blocks, ragged
    # last column tile) exercising the online-softmax path + ragged rows.
    B4, N4 = 12, 320
    kp4, kn4 = jax.random.split(jax.random.PRNGKey(2))
    p4 = jax.random.normal(kp4, (B4, 1), dtype=jnp.float32) * 2.0
    n4 = jax.random.normal(kn4, (B4, N4), dtype=jnp.float32) * 2.0

    out4 = jax.block_until_ready(loss(p4, n4, block_cols=128))
    ref4 = _ref_margin_loss(p4, n4, 6.0)
    assert jnp.allclose(out4, ref4, rtol=1e-4, atol=1e-4), (out4, ref4)

    out4a = jax.block_until_ready(loss_adv(p4, n4, block_cols=128))
    ref4a = _ref_margin_loss(p4, n4, 6.0, 1.0)
    assert jnp.allclose(out4a, ref4a, rtol=1e-4, atol=1e-4), (out4a, ref4a)

    print("KERNEL_OK")
</pallas_src>

<mosaic_0001>
module attributes {stable_mosaic.version = 11 : i64} {
  func.func @kernel(%arg0: i32, %arg1: i32, %arg2: memref<8x1xf32, #tpu.memory_space<vmem>>, %arg3: memref<8x128xf32, #tpu.memory_space<vmem>>, %arg4: memref<1x8x128xf32, #tpu.memory_space<vmem>>) attributes {dimension_semantics = [#tpu.dimension_semantics<parallel>, #tpu.dimension_semantics<arbitrary>], iteration_bounds = array<i64: 2, 1>, scalar_prefetch = 0 : i64, scratch_operands = 0 : i64, tpu.core_type = #tpu.core_type<tc>, window_params = [{transform_indices = @transform_0, window_bounds = array<i64: 8, 1>}, {transform_indices = @transform_1, window_bounds = array<i64: 8, 128>}, {transform_indices = @transform_2, window_bounds = array<i64: 1, 8, 128>}]} {
    %c0 = arith.constant 0 : index
    %c0_0 = arith.constant 0 : index
    %0 = vector.load %arg2[%c0, %c0_0] : memref<8x1xf32, #tpu.memory_space<vmem>>, vector<8x1xf32>
    %c0_1 = arith.constant 0 : index
    %c0_2 = arith.constant 0 : index
    %1 = vector.load %arg3[%c0_1, %c0_2] : memref<8x128xf32, #tpu.memory_space<vmem>>, vector<8x128xf32>
    %c8_i32 = arith.constant 8 : i32
    %2 = arith.muli %arg0, %c8_i32 : i32
    %3 = tpu.iota {dimensions = array<i32: 0>} : vector<8x1xi32>
    %4 = vector.broadcast %2 : i32 to vector<8x1xi32>
    %5 = arith.addi %4, %3 : vector<8x1xi32>
    %c128_i32 = arith.constant 128 : i32
    %6 = arith.muli %arg1, %c128_i32 : i32
    %7 = tpu.iota {dimensions = array<i32: 1>} : vector<8x128xi32>
    %8 = vector.broadcast %6 : i32 to vector<8x128xi32>
    %9 = arith.addi %8, %7 : vector<8x128xi32>
    %c16_i32 = arith.constant 16 : i32
    %10 = vector.broadcast %c16_i32 : i32 to vector<8x1xi32>
    %11 = arith.cmpi slt, %5, %10 : vector<8x1xi32>
    %c128_i32_3 = arith.constant 128 : i32
    %12 = vector.broadcast %c128_i32_3 : i32 to vector<8x128xi32>
    %13 = arith.cmpi slt, %9, %12 : vector<8x128xi32>
    %14 = vector.broadcast %11 : vector<8x1xi1> to vector<8x128xi1>
    %15 = arith.andi %14, %13 : vector<8x128xi1>
    %16 = vector.broadcast %0 : vector<8x1xf32> to vector<8x128xf32>
    %17 = arith.subf %16, %1 : vector<8x128xf32>
    %cst = arith.constant -6.000000e+00 : f32
    %18 = vector.broadcast %cst : f32 to vector<8x128xf32>
    %19 = arith.maximumf %17, %18 : vector<8x128xf32>
    %cst_4 = arith.constant 0.000000e+00 : f32
    %20 = vector.broadcast %cst_4 : f32 to vector<8x128xf32>
    %21 = arith.select %15, %19, %20 : vector<8x128xi1>, vector<8x128xf32>
    %22 = vector.shape_cast %21 : vector<8x128xf32> to vector<1x8x128xf32>
    %cst_5 = arith.constant dense<0.000000e+00> : vector<1xf32>
    %23 = vector.multi_reduction <add>, %22, %cst_5 [1, 2] : vector<1x8x128xf32> to vector<1xf32>
    %24 = vector.shape_cast %23 : vector<1xf32> to vector<1x1x1xf32>
    %25 = vector.extract %24[0, 0, 0] : f32 from vector<1x1x1xf32>
    %c0_i32 = arith.constant 0 : i32
    %26 = arith.cmpi eq, %arg1, %c0_i32 : i32
    %27 = arith.extui %26 : i1 to i32
    %c0_i32_6 = arith.constant 0 : i32
    %28 = arith.cmpi ne, %27, %c0_i32_6 : i32
    scf.if %28 {
      %cst_13 = arith.constant 0.000000e+00 : f32
      %33 = vector.broadcast %cst_13 : f32 to vector<1x8x128xf32>
      %c0_14 = arith.constant 0 : index
      %c0_15 = arith.constant 0 : index
      %c0_16 = arith.constant 0 : index
      %34 = vector.load %arg4[%c0_14, %c0_15, %c0_16] : memref<1x8x128xf32, #tpu.memory_space<vmem>>, vector<1x8x128xf32>
      tpu.vector_store %arg4[%c0_14, %c0_15, %c0_16], %33 {strides = array<i32>} : memref<1x8x128xf32, #tpu.memory_space<vmem>>, vector<1x8x128xf32>,
    } else {
    }
    %c0_7 = arith.constant 0 : index
    %c0_8 = arith.constant 0 : index
    %c0_9 = arith.constant 0 : index
    %29 = vector.load %arg4[%c0_7, %c0_8, %c0_9] : memref<1x8x128xf32, #tpu.memory_space<vmem>>, vector<1x8x128xf32>
    %30 = vector.broadcast %25 : f32 to vector<1x8x128xf32>
    %31 = arith.addf %29, %30 : vector<1x8x128xf32>
    %c0_10 = arith.constant 0 : index
    %c0_11 = arith.constant 0 : index
    %c0_12 = arith.constant 0 : index
    %32 = vector.load %arg4[%c0_10, %c0_11, %c0_12] : memref<1x8x128xf32, #tpu.memory_space<vmem>>, vector<1x8x128xf32>
    tpu.vector_store %arg4[%c0_10, %c0_11, %c0_12], %31 {strides = array<i32>} : memref<1x8x128xf32, #tpu.memory_space<vmem>>, vector<1x8x128xf32>,
    return
  }
  func.func @transform_0(%arg0: i32, %arg1: i32) -> (i32, i32) {
    %c0_i32 = arith.constant 0 : i32
    %c0_i32_0 = arith.constant 0 : i32
    return %arg0, %c0_i32 : i32, i32
  }
  func.func @transform_1(%arg0: i32, %arg1: i32) -> (i32, i32) {
    %c0_i32 = arith.constant 0 : i32
    return %arg0, %arg1 : i32, i32
  }
  func.func @transform_2(%arg0: i32, %arg1: i32) -> (i32, i32, i32) {
    %c0_i32 = arith.constant 0 : i32
    %c0_i32_0 = arith.constant 0 : i32
    %c0_i32_1 = arith.constant 0 : i32
    return %arg0, %c0_i32, %c0_i32_0 : i32, i32, i32
  }
}

</mosaic_0001>

<llo_original>
// kernel: tpu_custom_call.1
$region0: #{tpu_custom_call.1}
  #allocation0 [shape = 'u32[]', space=smem, size = 0x4, offset = 0x4, fixed_abs, tag = 'smem constant byte address 0x4 - core index']
  #allocation1 [shape = 'u32[144,128]{1,0:T(1,128)}', space=vmem, size = 0x12000, scoped, tag = 'internal scratch']
  %s0 = inlined_call_operand.vmem [shape: f32[16,1], index: 0, kind: input, shape index: {}]
  %s1 = inlined_call_operand.vmem [shape: f32[16,128], index: 1, kind: input, shape index: {}]
  %s2 = inlined_call_operand.hbm [shape: f32[2,8,128], index: 2, kind: output, shape index: {}]
  %s3 = sld [smem:[#allocation0]]
  $region45: #{tpu_custom_call.1} parent=0
    _
  %s5 = ssub.s32 1, %s3
  %s6 = scalar_select 0, %s5, %s3
  $region1: #{tpu_custom_call.1} parent=0
    #allocation2 [shape = 'u8[8192]{0}', space=vmem, size = 0x2000, scoped, tag = 'output window, operand 0']
    #allocation3 [shape = 's32[2]{0}', space=sflag, size = 0x8, scoped, tag = 'scoped memory for tpu_custom_call.1']
    %7 = vsyncpa [#allocation3], 0
    %s8 = scalar_lea.sflag [#allocation3], 1
    %9 = vsyncpa %s8, 0
    loop: start=0, step=1, limit=4
    $region2: #{tpu_custom_call.1} parent=1 // loop_pre_header
      _
    $region3: #{tpu_custom_call.1} parent=1 // loop_header
      %s11 = sphi 0, %s15
      %p12 = scmp.ge.s32.totalorder %s11, 4
      %s18 = sphi 0, %s30
      %s19 = sphi 0, %s26
      %s20 = sphi 0, %s18
      %s21 = sphi 0, %s19
      %s22 = sphi 0, %s20
      %s23 = sphi 0, %s21
      %s33 = sphi 0, %s35
      %s36 = sphi 0, %s33
      %s37 = sphi 0, %s36
      %s53 = sphi 0, %s37
      %s61 = sphi 0, %s63
      %s64 = sphi 0, %s61
      %s65 = sphi 0, %s64
      %s81 = sphi 0, %s65
      %s87 = sphi 0, %s89
      %s90 = sphi 0, %s87
      %s91 = sphi 0, %s90
      %s107 = sphi 0, %s91
    $region4: #{tpu_custom_call.1} parent=1 // loop_header_branch
      %14 = sbr.rel (%p12) target = $region8
    $region5: #{tpu_custom_call.1} parent=1 // loop_body
      %s16 = ssub.s32 %s11, 1
      %s17 = ssub.s32 %s11, 2
      %s24 = sadd.s32 1, %s19
      %p25 = scmp.ge.s32.totalorder %s24, 1
      %s26 = scalar_select %p25, 0, %s24
      %s27 = sadd.s32 1, %s18
      %s28 = scalar_select %p25, %s27, %s18
      %p29 = scmp.ge.s32.totalorder %s28, 2
      %s30 = scalar_select %p29, 0, %s28
      %s31 = ssub.s32 %s18, %s30
      %p32 = scmp.eq.s32.totalorder %s31, 0
      %s34 = sadd.s32 %s33, 1
      %s35 = scalar_select %p32, %s33, %s34
      %p38 = pneg %p32
      %p39 = scmp.eq.s32.totalorder %s11, 1
      %p40 = por %p38, %p39
      %p41 = scmp.ne.s32.totalorder %s33, %s36
      %p42 = scmp.eq.s32.totalorder %s11, 0
      %p43 = por %p41, %p42
      %p44 = scmp.ne.s32.totalorder %s33, %s36
      %p45 = scmp.eq.s32.totalorder %s16, 1
      %p46 = por %p44, %p45
      %p47 = scmp.ne.s32.totalorder %s36, %s37
      %p48 = scmp.eq.s32.totalorder %s16, 0
      %p49 = por %p47, %p48
      %p50 = scmp.ne.s32.totalorder %s36, %s37
      %p51 = scmp.eq.s32.totalorder %s17, 1
      %p52 = por %p50, %p51
      %p54 = scmp.ne.s32.totalorder %s37, %s53
      %p55 = scmp.eq.s32.totalorder %s17, 0
      %p56 = por %p54, %p55
      %s57 = ssub.s32 %s18, %s30
      %s58 = ssub.s32 %s19, %s26
      %s59 = sor.u32 %s57, %s58
      %p60 = scmp.eq.s32.totalorder %s59, 0
      %s62 = sadd.s32 %s61, 1
      %s63 = scalar_select %p60, %s61, %s62
      %p66 = pneg %p60
      %p67 = scmp.eq.s32.totalorder %s11, 1
      %p68 = por %p66, %p67
      %p69 = scmp.ne.s32.totalorder %s61, %s64
      %p70 = scmp.eq.s32.totalorder %s11, 0
      %p71 = por %p69, %p70
      %p72 = scmp.ne.s32.totalorder %s61, %s64
      %p73 = scmp.eq.s32.totalorder %s16, 1
      %p74 = por %p72, %p73
      %p75 = scmp.ne.s32.totalorder %s64, %s65
      %p76 = scmp.eq.s32.totalorder %s16, 0
      %p77 = por %p75, %p76
      %p78 = scmp.ne.s32.totalorder %s64, %s65
      %p79 = scmp.eq.s32.totalorder %s17, 1
      %p80 = por %p78, %p79
      %p82 = scmp.ne.s32.totalorder %s65, %s81
      %p83 = scmp.eq.s32.totalorder %s17, 0
      %p84 = por %p82, %p83
      %s85 = ssub.s32 %s18, %s30
      %p86 = scmp.eq.s32.totalorder %s85, 0
      %s88 = sadd.s32 %s87, 1
      %s89 = scalar_select %p86, %s87, %s88
      %p92 = pneg %p86
      %p93 = scmp.eq.s32.totalorder %s11, 1
      %p94 = por %p92, %p93
      %p95 = scmp.ne.s32.totalorder %s87, %s90
      %p96 = scmp.eq.s32.totalorder %s11, 0
      %p97 = por %p95, %p96
      %p98 = scmp.ne.s32.totalorder %s87, %s90
      %p99 = scmp.eq.s32.totalorder %s16, 1
      %p100 = por %p98, %p99
      %p101 = scmp.ne.s32.totalorder %s90, %s91
      %p102 = scmp.eq.s32.totalorder %s16, 0
      %p103 = por %p101, %p102
      %p104 = scmp.ne.s32.totalorder %s90, %s91
      %p105 = scmp.eq.s32.totalorder %s17, 1
      %p106 = por %p104, %p105
      %p108 = scmp.ne.s32.totalorder %s91, %s107
      %p109 = scmp.eq.s32.totalorder %s17, 0
      %p110 = por %p108, %p109
      %p111 = scmp.le.s32.totalorder 1, %s11
      %p112 = scmp.lt.s32.totalorder %s11, 3
      %p113 = pnand %p111, %p112
      %p114 = pneg %p113
      // Predicated region
      $region9: #{tpu_custom_call.1} parent=5 // pred_check
        _
      $region10: #{tpu_custom_call.1} parent=5 // pred_check_branch
        %116 = sbr.rel (%p113) target = $region12
      $region11: #{tpu_custom_call.1} parent=5 // pred_region
        %s117 = ssub.s32 %s11, 1
      $region12: #{tpu_custom_call.1} parent=5 // pred_fallthru
        _
      %p118 = scmp.lt.s32.totalorder %s11, 2
      // Predicated region
      $region13: #{tpu_custom_call.1} parent=5 // pred_check
        %p119 = pneg %p118
      $region14: #{tpu_custom_call.1} parent=5 // pred_check_branch
        %121 = sbr.rel (%p119) target = $region16
      $region15: #{tpu_custom_call.1} parent=5 // pred_region
        // Predicated region
        $region17: #{tpu_custom_call.1} parent=15 // pred_check
          %p122 = pneg %p43
        $region18: #{tpu_custom_call.1} parent=15 // pred_check_branch
          %124 = sbr.rel (%p122) target = $region20
        $region19: #{tpu_custom_call.1} parent=15 // pred_region
          %p125 = scmp.lt.s32.totalorder %s18, 1
          %s126 = scalar_select %p125, %s18, 1
          %s127 = smul.addr %s126, 8
          %s128 = scalar_lea.vmem %s0, %s127
        $region20: #{tpu_custom_call.1} parent=15 // pred_fallthru
          _
        // Predicated region
        $region21: #{tpu_custom_call.1} parent=15 // pred_check
          %p129 = pneg %p71
        $region22: #{tpu_custom_call.1} parent=15 // pred_check_branch
          %131 = sbr.rel (%p129) target = $region24
        $region23: #{tpu_custom_call.1} parent=15 // pred_region
          %p132 = scmp.lt.s32.totalorder %s18, 1
          %s133 = scalar_select %p132, %s18, 1
          %p134 = scmp.lt.s32.totalorder %s19, 0
          %s135 = scalar_select %p134, %s19, 0
          %s136 = sadd.s32 %s135, %s133
          %s137 = smul.addr %s136, 8
          %s138 = scalar_lea.vmem %s1, %s137
        $region24: #{tpu_custom_call.1} parent=15 // pred_fallthru
          _
      $region16: #{tpu_custom_call.1} parent=5 // pred_fallthru
        _
      %p139 = scmp.le.s32.totalorder 1, %s11
      %p140 = scmp.lt.s32.totalorder %s11, 3
      %p141 = pnand %p139, %p140
      %p142 = pneg %p141
      // Predicated region
      $region25: #{tpu_custom_call.1} parent=5 // pred_check
        _
      $region26: #{tpu_custom_call.1} parent=5 // pred_check_branch
        %144 = sbr.rel (%p141) target = $region28
      $region27: #{tpu_custom_call.1} parent=5 // pred_region
        %s145 = ssub.s32 %s11, 1
        %p146 = scmp.lt.s32.totalorder %s20, 1
        %s147 = scalar_select %p146, %s20, 1
        %s148 = smul.addr %s147, 8
        %s149 = scalar_lea.vmem %s0, %s148
        %p150 = pneg %p49
        %p151 = pneg %p46
        %p152 = scmp.lt.s32.totalorder %s20, 1
        %s153 = scalar_select %p152, %s20, 1
        %p154 = scmp.lt.s32.totalorder %s21, 0
        %s155 = scalar_select %p154, %s21, 0
        %s156 = sadd.s32 %s155, %s153
        %s157 = smul.addr %s156, 8
        %s158 = scalar_lea.vmem %s1, %s157
        %p159 = pneg %p77
        %p160 = pneg %p74
        %p161 = pneg %p103
        %p162 = pneg %p100
        %s163 = sand.u32 %s90, 1
        %s164 = scalar_lea.sflag [#allocation3], %s163
        %s165 = sand.u32 %s90, 1
        %s166 = smul.addr %s165, 8
        %s167 = scalar_lea.vmem [#allocation2], %s166
        %p168 = scmp.lt.s32.totalorder %s20, 1
        %s169 = scalar_select %p168, %s20, 1
        %s170 = smul.addr %s169, 8
        %s171 = scalar_lea.vmem %s0, %s170
        %p172 = scmp.lt.s32.totalorder %s20, 1
        %s173 = scalar_select %p172, %s20, 1
        %p174 = scmp.lt.s32.totalorder %s21, 0
        %s175 = scalar_select %p174, %s21, 0
        %s176 = sadd.s32 %s175, %s173
        %s177 = smul.addr %s176, 8
        %s178 = scalar_lea.vmem %s1, %s177
        %v179 = vld [vmem:[%s171] sm:$0xff]
        %v180 = vld [vmem:[%s178] sm:$0xff]
        %s181 = smul.u32 %s20, 8
        %v182 = vlaneseq
        %v183 = vshrl.u32 %v182, 7
        %v184 = vstv %s181
        %v185 = vadd.s32 %v184, %v183
        %s186 = smul.u32 %s21, 128
        %v187 = vlaneseq
        %v188 = vand.u32 %v187, 127
        %v189 = vstv %s186
        %v190 = vadd.s32 %v189, %v188
        %vm191 = vcmp.lt.s32.totalorder %v185, 16
        %vm192 = vcmp.lt.s32.totalorder %v190, 128
        %v193 = vsel %vm191, 1, 0
        %vm194 = vcmp.eq.s32.totalorder %v193, 1
        %vm195 = vmand %vm194, %vm192
        %197 = vset.pattern.permute.xlu0 0
        %198 = vperm.xlu0 %197, %v179
        %v199 = vpop.permute.xlu0 %198
        %v201 = vsub.f32 %v199, %v180
        %v202 = vmax.f32 %v201, -6.0
        %v203 = vsel %vm195, %v202, 0.0
        %204 = vadd.xlane.f32.xlu0 %v203
        %v205 = vpop.xlane.xlu0 %204
        %v206 = vrot.slane %v205, 4
        %v207 = vadd.f32 %v205, %v206
        %v208 = vrot.slane %v207, 2
        %v209 = vadd.f32 %v207, %v208
        %v210 = vrot.slane %v209, 1
        %v211 = vadd.f32 %v209, %v210
        %s212 = vtos %v211
        %p213 = scmp.eq.s32.totalorder %s21, 0
        // Predicated region
        $region29: #{tpu_custom_call.1} parent=27 // pred_check
          %p214 = pneg %p213
        $region30: #{tpu_custom_call.1} parent=27 // pred_check_branch
          %216 = sbr.rel (%p214) target = $region32
        $region31: #{tpu_custom_call.1} parent=27 // pred_region
          %217 = vst [vmem:[%s167] sm:$0xff] 0.0
        $region32: #{tpu_custom_call.1} parent=27 // pred_fallthru
          _
        %v218 = vld [vmem:[%s167] sm:$0xff]
        %v219 = vstv %s212
        %v220 = vadd.f32 %v218, %v219
        %221 = vst [vmem:[%s167] sm:$0xff] %v220
        %s222 = sand.u32 %s90, 1
        %s223 = scalar_lea.sflag [#allocation3], %s222
        %s224 = sand.u32 %s90, 1
        %s225 = smul.addr %s224, 8
        %s226 = scalar_lea.vmem [#allocation2], %s225
        // Predicated region
        $region33: #{tpu_custom_call.1} parent=27 // pred_check
          %p227 = pneg %p100
        $region34: #{tpu_custom_call.1} parent=27 // pred_check_branch
          %229 = sbr.rel (%p227) target = $region36
        $region35: #{tpu_custom_call.1} parent=27 // pred_region
          %s231 = ssub.s32 128, 128
          %232 = vsyncadd %s223, %s231
          %s233 = smul.addr %s20, 128
          %s234 = scalar_lea.hbm %s2, %s233
          %s236 = sshll.u32 %s226, 4
          %s237 = int_to_ptr.vmem [resolvable:$true] %s236
          %239 = dma.vmem_to_hbm [thread:$0]  %s237, 128, %s234, %s223
        $region36: #{tpu_custom_call.1} parent=27 // pred_fallthru
          _
      $region28: #{tpu_custom_call.1} parent=5 // pred_fallthru
        _
      %p240 = scmp.le.s32.totalorder 2, %s11
      // Predicated region
      $region37: #{tpu_custom_call.1} parent=5 // pred_check
        %p241 = pneg %p240
      $region38: #{tpu_custom_call.1} parent=5 // pred_check_branch
        %243 = sbr.rel (%p241) target = $region40
      $region39: #{tpu_custom_call.1} parent=5 // pred_region
        %s244 = ssub.s32 %s11, 2
        // Predicated region
        $region41: #{tpu_custom_call.1} parent=39 // pred_check
          %p245 = pneg %p106
        $region42: #{tpu_custom_call.1} parent=39 // pred_check_branch
          %247 = sbr.rel (%p245) target = $region44
        $region43: #{tpu_custom_call.1} parent=39 // pred_region
          %s248 = sand.u32 %s91, 1
          %s249 = scalar_lea.sflag [#allocation3], %s248
          %s250 = sand.u32 %s91, 1
          %s251 = smul.addr %s250, 8
          %s252 = scalar_lea.vmem [#allocation2], %s251
          %253 = dma.done %s249, 128
        $region44: #{tpu_custom_call.1} parent=39 // pred_fallthru
          _
      $region40: #{tpu_custom_call.1} parent=5 // pred_fallthru
        _
    $region6: #{tpu_custom_call.1} parent=1 // loop_footer
      %s15 = sadd.s32 1, %s11
    $region7: #{tpu_custom_call.1} parent=1 // loop_footer_branch
      %10 = sbr.rel target = $region3
    $region8: #{tpu_custom_call.1} parent=1 // loop_exit
      _
    %254 = vsyncpa [#allocation3], 1
    %s255 = scalar_lea.sflag [#allocation3], 1
    %256 = vsyncpa %s255, 1

</llo_original>
